<compile_context>
chip_gen: v7x
topology: tpu7x:2x2x1
jax: 0.10.0
libtpu: 0.0.40
codegen_flags: <defaults>
</compile_context>

<pallas_src>
import jax
import jax.numpy as jnp
from jax.experimental import pallas as pl
from jax.experimental.pallas import tpu as pltpu


# ---------------------------------------------------------------------------
# Fused kernel: per-step tiny dot (free under DMA) + streaming broadcast add.
# ---------------------------------------------------------------------------
def _fused_dot_add_kernel(x1_ref, x2_ref, inp_ref, out_ref):
    # Dot product accumulated in f32 (VPU mul + XLU cross-lane reduce).
    s = jnp.sum(x1_ref[...].astype(jnp.float32) * x2_ref[...].astype(jnp.float32))
    # Add in the tile's native dtype so packed bf16/int8 tiles stay packed.
    out_ref[...] = inp_ref[...] + s.astype(inp_ref.dtype)


def _pick_tiles(R, C, itemsize, target_bytes=1 << 20):
    """Lane-dense tiles of ~target_bytes; >=4 grid programs when possible."""
    lanes = 128
    sub = max(8, 32 // itemsize)                       # 8 f32, 16 bf16, 32 int8
    # Column tile: full C when it fits the budget (full-dim blocks are always
    # legal), else the largest multiple of 128 under the per-block budget.
    max_tc = max(lanes, (target_bytes // (sub * itemsize)) // lanes * lanes)
    tc = C if C <= max_tc else max_tc
    if R * C * itemsize <= target_bytes:
        return R, tc                                   # whole array in one block
    # Row tile: fill the block budget, sublane aligned.
    tr = max(sub, min(R, (target_bytes // (tc * itemsize)) // sub * sub))
    # Keep at least 4 grid programs so v7x's two TCs each overlap prefetch
    # with compute/writeback.
    while tr > sub and pl.cdiv(R, tr) * pl.cdiv(C, tc) < 4:
        tr = max(sub, (tr // 2) // sub * sub)
    return tr, tc


def dot_add(x1, x2, inp):
    """v2 = dot(x1, x2) + inp (torch.dot semantics: x1, x2 are 1-D vectors)."""
    assert x1.ndim == 1 and x2.ndim == 1 and x1.shape == x2.shape
    assert inp.ndim == 2
    n = x1.shape[0]

    # Sublane-dense vector layout: (rows, 128), zero padded (zeros are inert
    # under the dot).  Native dtype — the f32 upcast happens inside the kernel.
    lanes = 128
    n_pad = pl.cdiv(n, lanes) * lanes
    if n_pad != n:
        x1 = jnp.pad(x1, (0, n_pad - n))
        x2 = jnp.pad(x2, (0, n_pad - n))
    rows = n_pad // lanes
    x1_2d = x1.reshape(rows, lanes)
    x2_2d = x2.reshape(rows, lanes)

    R, C = inp.shape
    itemsize = jnp.dtype(inp.dtype).itemsize
    tr, tc = _pick_tiles(R, C, itemsize)
    grid = (pl.cdiv(R, tr), pl.cdiv(C, tc))

    vec_bytes = 2 * n_pad * jnp.dtype(x1.dtype).itemsize
    cost = pl.CostEstimate(
        flops=R * C + grid[0] * grid[1] * 2 * n_pad,   # add + per-step dot
        transcendentals=0,
        bytes_accessed=2 * R * C * itemsize + vec_bytes,
    )

    return pl.pallas_call(
        _fused_dot_add_kernel,
        out_shape=jax.ShapeDtypeStruct(inp.shape, inp.dtype),
        grid=grid,
        in_specs=[
            # Vector blocks: same block index every step -> resident in VMEM.
            pl.BlockSpec((rows, lanes), lambda i, j: (0, 0)),
            pl.BlockSpec((rows, lanes), lambda i, j: (0, 0)),
            pl.BlockSpec((tr, tc), lambda i, j: (i, j)),
        ],
        out_specs=pl.BlockSpec((tr, tc), lambda i, j: (i, j)),
        compiler_params=pltpu.CompilerParams(
            dimension_semantics=("parallel", "parallel"),
        ),
        cost_estimate=cost,
    )(x1_2d, x2_2d, inp)


if __name__ == "__main__":
    key = jax.random.PRNGKey(0)
    k1, k2, k3 = jax.random.split(key, 3)

    # torch.dot requires 1-D inputs, so x1/x2 are vectors; inp is the 2-D
    # tensor the scalar is broadcast-added onto.  Shapes kept modest but large
    # enough to exercise a 4-step parallel grid of lane-dense 1 MiB tiles.
    N = 256
    R, C = 1024, 1024

    x1 = jax.random.normal(k1, (N,), dtype=jnp.float32)
    x2 = jax.random.normal(k2, (N,), dtype=jnp.float32)
    inp = jax.random.normal(k3, (R, C), dtype=jnp.float32)

    out = dot_add(x1, x2, inp)
    jax.block_until_ready(out)

    # Reference check in plain JAX.
    ref = jnp.dot(x1, x2) + inp
    assert out.shape == ref.shape and out.dtype == ref.dtype
    assert jnp.allclose(out, ref, atol=1e-4, rtol=1e-5), "mismatch vs reference"

    print("KERNEL_OK")
</pallas_src>

<mosaic_0001>
module attributes {stable_mosaic.version = 11 : i64} {
  func.func @_fused_dot_add_kernel(%arg0: i32, %arg1: i32, %arg2: memref<2x128xf32, #tpu.memory_space<vmem>>, %arg3: memref<2x128xf32, #tpu.memory_space<vmem>>, %arg4: memref<256x1024xf32, #tpu.memory_space<vmem>>, %arg5: memref<256x1024xf32, #tpu.memory_space<vmem>>) attributes {dimension_semantics = [#tpu.dimension_semantics<parallel>, #tpu.dimension_semantics<parallel>], iteration_bounds = array<i64: 4, 1>, scalar_prefetch = 0 : i64, scratch_operands = 0 : i64, tpu.core_type = #tpu.core_type<tc>, window_params = [{pipeline_mode = #tpu.pipeline_mode<synchronous>, transform_indices = @transform_0, window_bounds = array<i64: 2, 128>}, {pipeline_mode = #tpu.pipeline_mode<synchronous>, transform_indices = @transform_1, window_bounds = array<i64: 2, 128>}, {transform_indices = @transform_2, window_bounds = array<i64: 256, 1024>}, {transform_indices = @transform_3, window_bounds = array<i64: 256, 1024>}]} {
    %c0 = arith.constant 0 : index
    %c0_0 = arith.constant 0 : index
    %0 = vector.load %arg2[%c0, %c0_0] : memref<2x128xf32, #tpu.memory_space<vmem>>, vector<2x128xf32>
    %c0_1 = arith.constant 0 : index
    %c0_2 = arith.constant 0 : index
    %1 = vector.load %arg3[%c0_1, %c0_2] : memref<2x128xf32, #tpu.memory_space<vmem>>, vector<2x128xf32>
    %2 = arith.mulf %0, %1 : vector<2x128xf32>
    %3 = vector.shape_cast %2 : vector<2x128xf32> to vector<1x2x128xf32>
    %cst = arith.constant dense<0.000000e+00> : vector<1xf32>
    %4 = vector.multi_reduction <add>, %3, %cst [1, 2] : vector<1x2x128xf32> to vector<1xf32>
    %5 = vector.shape_cast %4 : vector<1xf32> to vector<1x1x1xf32>
    %6 = vector.extract %5[0, 0, 0] : f32 from vector<1x1x1xf32>
    %c0_3 = arith.constant 0 : index
    %c0_4 = arith.constant 0 : index
    %7 = vector.load %arg4[%c0_3, %c0_4] : memref<256x1024xf32, #tpu.memory_space<vmem>>, vector<256x1024xf32>
    %8 = vector.broadcast %6 : f32 to vector<256x1024xf32>
    %9 = arith.addf %7, %8 : vector<256x1024xf32>
    %c0_5 = arith.constant 0 : index
    %c0_6 = arith.constant 0 : index
    %10 = vector.load %arg5[%c0_5, %c0_6] : memref<256x1024xf32, #tpu.memory_space<vmem>>, vector<256x1024xf32>
    tpu.vector_store %arg5[%c0_5, %c0_6], %9 {strides = array<i32>} : memref<256x1024xf32, #tpu.memory_space<vmem>>, vector<256x1024xf32>,
    return
  }
  func.func @transform_0(%arg0: i32, %arg1: i32) -> (i32, i32) {
    %c0_i32 = arith.constant 0 : i32
    %c0_i32_0 = arith.constant 0 : i32
    %c0_i32_1 = arith.constant 0 : i32
    return %c0_i32, %c0_i32_0 : i32, i32
  }
  func.func @transform_1(%arg0: i32, %arg1: i32) -> (i32, i32) {
    %c0_i32 = arith.constant 0 : i32
    %c0_i32_0 = arith.constant 0 : i32
    %c0_i32_1 = arith.constant 0 : i32
    return %c0_i32, %c0_i32_0 : i32, i32
  }
  func.func @transform_2(%arg0: i32, %arg1: i32) -> (i32, i32) {
    %c0_i32 = arith.constant 0 : i32
    return %arg0, %arg1 : i32, i32
  }
  func.func @transform_3(%arg0: i32, %arg1: i32) -> (i32, i32) {
    %c0_i32 = arith.constant 0 : i32
    return %arg0, %arg1 : i32, i32
  }
}

</mosaic_0001>

<llo_original>
// kernel: tpu_custom_call.1
$region0: #{tpu_custom_call.1}
  #allocation0 [shape = 'u32[]', space=smem, size = 0x4, offset = 0x4, fixed_abs, tag = 'smem constant byte address 0x4 - core index']
  #allocation1 [shape = 'u32[144,128]{1,0:T(1,128)}', space=vmem, size = 0x12000, scoped, tag = 'internal scratch']
  %s0 = inlined_call_operand.hbm [shape: f32[2,128], index: 0, kind: input, shape index: {}]
  %s1 = inlined_call_operand.hbm [shape: f32[2,128], index: 1, kind: input, shape index: {}]
  %s2 = inlined_call_operand.hbm [shape: f32[1024,1024], index: 2, kind: input, shape index: {}]
  %s3 = inlined_call_operand.hbm [shape: f32[1024,1024], index: 3, kind: output, shape index: {}]
  %s4 = sld [smem:[#allocation0]]
  $region57: #{tpu_custom_call.1} parent=0
    _
  %s6 = ssub.s32 1, %s4
  %s7 = scalar_select 0, %s6, %s4
  $region1: #{tpu_custom_call.1} parent=0
    #allocation2 [shape = 'u8[1024]{0}', space=vmem, size = 0x400, scoped, tag = 'input window, operand 0, single buffered']
    #allocation3 [shape = 's32[2]{0}', space=sflag, size = 0x8, scoped, tag = 'scoped memory for tpu_custom_call.1']
    #allocation4 [shape = 's32[2]{0}', space=sflag, size = 0x8, scoped, tag = 'scoped memory for tpu_custom_call.1']
    #allocation5 [shape = 'u8[1024]{0}', space=vmem, size = 0x400, scoped, tag = 'input window, operand 1, single buffered']
    #allocation6 [shape = 's32[1]{0}', space=sflag, size = 0x4, scoped, tag = 'scoped memory for tpu_custom_call.1']
    #allocation7 [shape = 'u8[2097152]{0}', space=vmem, size = 0x200000, scoped, tag = 'input window, operand 2']
    #allocation8 [shape = 'u8[2097152]{0}', space=vmem, size = 0x200000, scoped, tag = 'output window, operand 0']
    %8 = vsyncpa [#allocation3], 0
    %9 = vsyncpa [#allocation6], 0
    %10 = vsyncpa [#allocation4], 0
    %s11 = scalar_lea.sflag [#allocation4], 1
    %12 = vsyncpa %s11, 0
    loop: start=0, step=1, limit=6
    $region2: #{tpu_custom_call.1} parent=1 // loop_pre_header
      _
    $region3: #{tpu_custom_call.1} parent=1 // loop_header
      %s14 = sphi 0, %s18
      %p15 = scmp.ge.s32.totalorder %s14, 6
      %s21 = sphi 0, %s33
      %s22 = sphi 0, %s29
      %s23 = sphi 0, %s21
      %s24 = sphi 0, %s22
      %s25 = sphi 0, %s23
      %s26 = sphi 0, %s24
      %s34 = sphi 0, %s34
      %s36 = sphi 0, %s34
      %s37 = sphi 0, %s36
      %s51 = sphi 0, %s37
      %s55 = sphi 0, %s55
      %s57 = sphi 0, %s55
      %s58 = sphi 0, %s57
      %s72 = sphi 0, %s58
      %s80 = sphi 0, %s82
      %s83 = sphi 0, %s80
      %s84 = sphi 0, %s83
      %s100 = sphi 0, %s84
      %s108 = sphi 0, %s110
      %s111 = sphi 0, %s108
      %s112 = sphi 0, %s111
      %s128 = sphi 0, %s112
    $region4: #{tpu_custom_call.1} parent=1 // loop_header_branch
      %17 = sbr.rel (%p15) target = $region8
    $region5: #{tpu_custom_call.1} parent=1 // loop_body
      %s19 = ssub.s32 %s14, 1
      %s20 = ssub.s32 %s14, 2
      %s27 = sadd.s32 1, %s22
      %p28 = scmp.ge.s32.totalorder %s27, 1
      %s29 = scalar_select %p28, 0, %s27
      %s30 = sadd.s32 1, %s21
      %s31 = scalar_select %p28, %s30, %s21
      %p32 = scmp.ge.s32.totalorder %s31, 4
      %s33 = scalar_select %p32, 0, %s31
      %s35 = sadd.s32 %s34, 1
      %p38 = scmp.eq.s32.totalorder %s14, 3
      %p39 = scmp.ne.s32.totalorder %s34, %s36
      %p40 = scmp.eq.s32.totalorder %s14, 0
      %p41 = por %p39, %p40
      %p42 = scmp.ne.s32.totalorder %s34, %s36
      %p43 = scmp.eq.s32.totalorder %s19, 3
      %p44 = por %p42, %p43
      %p45 = scmp.ne.s32.totalorder %s36, %s37
      %p46 = scmp.eq.s32.totalorder %s19, 0
      %p47 = por %p45, %p46
      %p48 = scmp.ne.s32.totalorder %s36, %s37
      %p49 = scmp.eq.s32.totalorder %s20, 3
      %p50 = por %p48, %p49
      %p52 = scmp.ne.s32.totalorder %s37, %s51
      %p53 = scmp.eq.s32.totalorder %s20, 0
      %p54 = por %p52, %p53
      %s56 = sadd.s32 %s55, 1
      %p59 = scmp.eq.s32.totalorder %s14, 3
      %p60 = scmp.ne.s32.totalorder %s55, %s57
      %p61 = scmp.eq.s32.totalorder %s14, 0
      %p62 = por %p60, %p61
      %p63 = scmp.ne.s32.totalorder %s55, %s57
      %p64 = scmp.eq.s32.totalorder %s19, 3
      %p65 = por %p63, %p64
      %p66 = scmp.ne.s32.totalorder %s57, %s58
      %p67 = scmp.eq.s32.totalorder %s19, 0
      %p68 = por %p66, %p67
      %p69 = scmp.ne.s32.totalorder %s57, %s58
      %p70 = scmp.eq.s32.totalorder %s20, 3
      %p71 = por %p69, %p70
      %p73 = scmp.ne.s32.totalorder %s58, %s72
      %p74 = scmp.eq.s32.totalorder %s20, 0
      %p75 = por %p73, %p74
      %s76 = ssub.s32 %s21, %s33
      %s77 = ssub.s32 %s22, %s29
      %s78 = sor.u32 %s76, %s77
      %p79 = scmp.eq.s32.totalorder %s78, 0
      %s81 = sadd.s32 %s80, 1
      %s82 = scalar_select %p79, %s80, %s81
      %p85 = pneg %p79
      %p86 = scmp.eq.s32.totalorder %s14, 3
      %p87 = por %p85, %p86
      %p88 = scmp.ne.s32.totalorder %s80, %s83
      %p89 = scmp.eq.s32.totalorder %s14, 0
      %p90 = por %p88, %p89
      %p91 = scmp.ne.s32.totalorder %s80, %s83
      %p92 = scmp.eq.s32.totalorder %s19, 3
      %p93 = por %p91, %p92
      %p94 = scmp.ne.s32.totalorder %s83, %s84
      %p95 = scmp.eq.s32.totalorder %s19, 0
      %p96 = por %p94, %p95
      %p97 = scmp.ne.s32.totalorder %s83, %s84
      %p98 = scmp.eq.s32.totalorder %s20, 3
      %p99 = por %p97, %p98
      %p101 = scmp.ne.s32.totalorder %s84, %s100
      %p102 = scmp.eq.s32.totalorder %s20, 0
      %p103 = por %p101, %p102
      %s104 = ssub.s32 %s21, %s33
      %s105 = ssub.s32 %s22, %s29
      %s106 = sor.u32 %s104, %s105
      %p107 = scmp.eq.s32.totalorder %s106, 0
      %s109 = sadd.s32 %s108, 1
      %s110 = scalar_select %p107, %s108, %s109
      %p113 = pneg %p107
      %p114 = scmp.eq.s32.totalorder %s14, 3
      %p115 = por %p113, %p114
      %p116 = scmp.ne.s32.totalorder %s108, %s111
      %p117 = scmp.eq.s32.totalorder %s14, 0
      %p118 = por %p116, %p117
      %p119 = scmp.ne.s32.totalorder %s108, %s111
      %p120 = scmp.eq.s32.totalorder %s19, 3
      %p121 = por %p119, %p120
      %p122 = scmp.ne.s32.totalorder %s111, %s112
      %p123 = scmp.eq.s32.totalorder %s19, 0
      %p124 = por %p122, %p123
      %p125 = scmp.ne.s32.totalorder %s111, %s112
      %p126 = scmp.eq.s32.totalorder %s20, 3
      %p127 = por %p125, %p126
      %p129 = scmp.ne.s32.totalorder %s112, %s128
      %p130 = scmp.eq.s32.totalorder %s20, 0
      %p131 = por %p129, %p130
      %p132 = scmp.le.s32.totalorder 1, %s14
      %p133 = scmp.lt.s32.totalorder %s14, 5
      %p134 = pnand %p132, %p133
      %p135 = pneg %p134
      // Predicated region
      $region9: #{tpu_custom_call.1} parent=5 // pred_check
        _
      $region10: #{tpu_custom_call.1} parent=5 // pred_check_branch
        %137 = sbr.rel (%p134) target = $region12
      $region11: #{tpu_custom_call.1} parent=5 // pred_region
        %s138 = ssub.s32 %s14, 1
        // Predicated region
        $region13: #{tpu_custom_call.1} parent=11 // pred_check
          %p139 = pneg %p47
        $region14: #{tpu_custom_call.1} parent=11 // pred_check_branch
          %141 = sbr.rel (%p139) target = $region16
        $region15: #{tpu_custom_call.1} parent=11 // pred_region
          %s143 = ssub.s32 32, 32
          %144 = vsyncadd [#allocation3], %s143
          %s146 = sshll.u32 [#allocation2], 4
          %s147 = int_to_ptr.vmem [resolvable:$true] %s146
          %149 = dma.hbm_to_vmem [thread:$0]  %s0, 32, %s147, [#allocation3]
        $region16: #{tpu_custom_call.1} parent=11 // pred_fallthru
          _
        // Predicated region
        $region17: #{tpu_custom_call.1} parent=11 // pred_check
          %p150 = pneg %p68
        $region18: #{tpu_custom_call.1} parent=11 // pred_check_branch
          %152 = sbr.rel (%p150) target = $region20
        $region19: #{tpu_custom_call.1} parent=11 // pred_region
          %s154 = ssub.s32 32, 32
          %155 = vsyncadd [#allocation6], %s154
          %s157 = sshll.u32 [#allocation5], 4
          %s158 = int_to_ptr.vmem [resolvable:$true] %s157
          %160 = dma.hbm_to_vmem [thread:$0]  %s1, 32, %s158, [#allocation6]
        $region20: #{tpu_custom_call.1} parent=11 // pred_fallthru
          _
      $region12: #{tpu_custom_call.1} parent=5 // pred_fallthru
        _
      %p161 = scmp.lt.s32.totalorder %s14, 4
      // Predicated region
      $region21: #{tpu_custom_call.1} parent=5 // pred_check
        %p162 = pneg %p161
      $region22: #{tpu_custom_call.1} parent=5 // pred_check_branch
        %164 = sbr.rel (%p162) target = $region24
      $region23: #{tpu_custom_call.1} parent=5 // pred_region
        // Predicated region
        $region25: #{tpu_custom_call.1} parent=23 // pred_check
          %p165 = pneg %p90
        $region26: #{tpu_custom_call.1} parent=23 // pred_check_branch
          %167 = sbr.rel (%p165) target = $region28
        $region27: #{tpu_custom_call.1} parent=23 // pred_region
          %s168 = sand.u32 %s14, 1
          %s169 = scalar_lea.sflag [#allocation3], %s168
          %s170 = sand.u32 %s80, 1
          %s171 = smul.addr %s170, 2048
          %s172 = scalar_lea.vmem [#allocation7], %s171
          %s173 = smul.u32 32, %s21
          %s174 = smul.u32 8, %s22
          %s176 = ssub.s32 32768, 32768
          %177 = vsyncadd %s169, %s176
          %s178 = smul.addr %s173, 8
          %s179 = sadd.s32 %s174, %s178
          %s180 = smul.addr %s179, 128
          %s181 = scalar_lea.hbm %s2, %s180
          %s182 = sshll.u32 %s172, 4
          %s183 = int_to_ptr.vmem [resolvable:$true] %s182
          %188 = dma.hbm_to_vmem [thread:$0]  %s181, 32768, %s183, %s169, 1024, 1024, 64
        $region28: #{tpu_custom_call.1} parent=23 // pred_fallthru
          _
      $region24: #{tpu_custom_call.1} parent=5 // pred_fallthru
        _
      %p189 = scmp.le.s32.totalorder 1, %s14
      %p190 = scmp.lt.s32.totalorder %s14, 5
      %p191 = pnand %p189, %p190
      %p192 = pneg %p191
      // Predicated region
      $region29: #{tpu_custom_call.1} parent=5 // pred_check
        _
      $region30: #{tpu_custom_call.1} parent=5 // pred_check_branch
        %194 = sbr.rel (%p191) target = $region32
      $region31: #{tpu_custom_call.1} parent=5 // pred_region
        %s195 = ssub.s32 %s14, 1
        // Predicated region
        $region33: #{tpu_custom_call.1} parent=31 // pred_check
          %p196 = pneg %p47
        $region34: #{tpu_custom_call.1} parent=31 // pred_check_branch
          %198 = sbr.rel (%p196) target = $region36
        $region35: #{tpu_custom_call.1} parent=31 // pred_region
          %199 = dma.done [#allocation3], 32
        $region36: #{tpu_custom_call.1} parent=31 // pred_fallthru
          _
        // Predicated region
        $region37: #{tpu_custom_call.1} parent=31 // pred_check
          %p200 = pneg %p68
        $region38: #{tpu_custom_call.1} parent=31 // pred_check_branch
          %202 = sbr.rel (%p200) target = $region40
        $region39: #{tpu_custom_call.1} parent=31 // pred_region
          %203 = dma.done [#allocation6], 32
        $region40: #{tpu_custom_call.1} parent=31 // pred_fallthru
          _
        %s204 = sand.u32 %s19, 1
        %s205 = scalar_lea.sflag [#allocation3], %s204
        %s206 = sand.u32 %s83, 1
        %s207 = smul.addr %s206, 2048
        %s208 = scalar_lea.vmem [#allocation7], %s207
        // Predicated region
        $region41: #{tpu_custom_call.1} parent=31 // pred_check
          %p209 = pneg %p96
        $region42: #{tpu_custom_call.1} parent=31 // pred_check_branch
          %211 = sbr.rel (%p209) target = $region44
        $region43: #{tpu_custom_call.1} parent=31 // pred_region
          %212 = dma.done %s205, 32768
        $region44: #{tpu_custom_call.1} parent=31 // pred_fallthru
          _
        %p213 = pneg %p47
        %p214 = pneg %p44
        %p215 = pneg %p68
        %p216 = pneg %p65
        %s217 = sand.u32 %s19, 1
        %s218 = scalar_lea.sflag [#allocation3], %s217
        %s219 = sand.u32 %s83, 1
        %s220 = smul.addr %s219, 2048
        %s221 = scalar_lea.vmem [#allocation7], %s220
        %p222 = pneg %p96
        %p223 = pneg %p93
        %p224 = pneg %p124
        %p225 = pneg %p121
        %s226 = sand.u32 %s111, 1
        %s227 = scalar_lea.sflag [#allocation4], %s226
        %s228 = sand.u32 %s111, 1
        %s229 = smul.addr %s228, 2048
        %s230 = scalar_lea.vmem [#allocation8], %s229
        %s231 = smul.u32 32, %s23
        %s232 = smul.u32 8, %s24
        %s233 = smul.u32 32, %s23
        %s234 = smul.u32 8, %s24
        %v235 = vld [vmem:[#allocation2] sm:$0x3]
        %v236 = vld [vmem:[#allocation5] sm:$0x3]
        %v237 = vmul.f32 %v235, %v236
        %vm238 = vcmask 1041408
        %v239 = vsel %vm238, %v237, 0.0
        %240 = vadd.xlane.f32.xlu0 %v239
        %v241 = vpop.xlane.xlu0 %240
        %v242 = vrot.slane %v241, 4
        %v243 = vadd.f32 %v241, %v242
        %v244 = vrot.slane %v243, 2
        %v245 = vadd.f32 %v243, %v244
        %v246 = vrot.slane %v245, 1
        %v247 = vadd.f32 %v245, %v246
        %s248 = vtos %v247
        %v249 = vld [vmem:[%s208] sm:$0xff]
        %v250 = vld [vmem:[%s208 + $0x8] sm:$0xff]
        %v251 = vld [vmem:[%s208 + $0x10] sm:$0xff]
        %v252 = vld [vmem:[%s208 + $0x18] sm:$0xff]
        %v253 = vld [vmem:[%s208 + $0x20] sm:$0xff]
        %v254 = vld [vmem:[%s208 + $0x28] sm:$0xff]
        %v255 = vld [vmem:[%s208 + $0x30] sm:$0xff]
        %v256 = vld [vmem:[%s208 + $0x38] sm:$0xff]
        %v257 = vld [vmem:[%s208 + $0x40] sm:$0xff]
        %v258 = vld [vmem:[%s208 + $0x48] sm:$0xff]
        %v259 = vld [vmem:[%s208 + $0x50] sm:$0xff]
        %v260 = vld [vmem:[%s208 + $0x58] sm:$0xff]
        %v261 = vld [vmem:[%s208 + $0x60] sm:$0xff]
        %v262 = vld [vmem:[%s208 + $0x68] sm:$0xff]
        %v263 = vld [vmem:[%s208 + $0x70] sm:$0xff]
        %v264 = vld [vmem:[%s208 + $0x78] sm:$0xff]
        %v265 = vld [vmem:[%s208 + $0x80] sm:$0xff]
        %v266 = vld [vmem:[%s208 + $0x88] sm:$0xff]
        %v267 = vld [vmem:[%s208 + $0x90] sm:$0xff]
        %v268 = vld [vmem:[%s208 + $0x98] sm:$0xff]
        %v269 = vld [vmem:[%s208 + $0xa0] sm:$0xff]
        %v270 = vld [vmem:[%s208 + $0xa8] sm:$0xff]
        %v271 = vld [vmem:[%s208 + $0xb0] sm:$0xff]
        %v272 = vld [vmem:[%s208 + $0xb8] sm:$0xff]
        %v273 = vld [vmem:[%s208 + $0xc0] sm:$0xff]
        %v274 = vld [vmem:[%s208 + $0xc8] sm:$0xff]
        %v275 = vld [vmem:[%s208 + $0xd0] sm:$0xff]
        %v276 = vld [vmem:[%s208 + $0xd8] sm:$0xff]
        %v277 = vld [vmem:[%s208 + $0xe0] sm:$0xff]
        %v278 = vld [vmem:[%s208 + $0xe8] sm:$0xff]
        %v279 = vld [vmem:[%s208 + $0xf0] sm:$0xff]
        %v280 = vld [vmem:[%s208 + $0xf8] sm:$0xff]
        %v281 = vld [vmem:[%s208 + $0x100] sm:$0xff]
        %v282 = vld [vmem:[%s208 + $0x108] sm:$0xff]
        %v283 = vld [vmem:[%s208 + $0x110] sm:$0xff]
        %v284 = vld [vmem:[%s208 + $0x118] sm:$0xff]
        %v285 = vld [vmem:[%s208 + $0x120] sm:$0xff]
        %v286 = vld [vmem:[%s208 + $0x128] sm:$0xff]
        %v287 = vld [vmem:[%s208 + $0x130] sm:$0xff]
        %v288 = vld [vmem:[%s208 + $0x138] sm:$0xff]
        %v289 = vld [vmem:[%s208 + $0x140] sm:$0xff]
        %v290 = vld [vmem:[%s208 + $0x148] sm:$0xff]
        %v291 = vld [vmem:[%s208 + $0x150] sm:$0xff]
        %v292 = vld [vmem:[%s208 + $0x158] sm:$0xff]
        %v293 = vld [vmem:[%s208 + $0x160] sm:$0xff]
        %v294 = vld [vmem:[%s208 + $0x168] sm:$0xff]
        %v295 = vld [vmem:[%s208 + $0x170] sm:$0xff]
        %v296 = vld [vmem:[%s208 + $0x178] sm:$0xff]
        %v297 = vld [vmem:[%s208 + $0x180] sm:$0xff]
        %v298 = vld [vmem:[%s208 + $0x188] sm:$0xff]
        %v299 = vld [vmem:[%s208 + $0x190] sm:$0xff]
        %v300 = vld [vmem:[%s208 + $0x198] sm:$0xff]
        %v301 = vld [vmem:[%s208 + $0x1a0] sm:$0xff]
        %v302 = vld [vmem:[%s208 + $0x1a8] sm:$0xff]
        %v303 = vld [vmem:[%s208 + $0x1b0] sm:$0xff]
        %v304 = vld [vmem:[%s208 + $0x1b8] sm:$0xff]
        %v305 = vld [vmem:[%s208 + $0x1c0] sm:$0xff]
        %v306 = vld [vmem:[%s208 + $0x1c8] sm:$0xff]
        %v307 = vld [vmem:[%s208 + $0x1d0] sm:$0xff]
        %v308 = vld [vmem:[%s208 + $0x1d8] sm:$0xff]
        %v309 = vld [vmem:[%s208 + $0x1e0] sm:$0xff]
        %v310 = vld [vmem:[%s208 + $0x1e8] sm:$0xff]
        %v311 = vld [vmem:[%s208 + $0x1f0] sm:$0xff]
        %v312 = vld [vmem:[%s208 + $0x1f8] sm:$0xff]
        %v313 = vld [vmem:[%s208 + $0x200] sm:$0xff]
        %v314 = vld [vmem:[%s208 + $0x208] sm:$0xff]
        %v315 = vld [vmem:[%s208 + $0x210] sm:$0xff]
        %v316 = vld [vmem:[%s208 + $0x218] sm:$0xff]
        %v317 = vld [vmem:[%s208 + $0x220] sm:$0xff]
        %v318 = vld [vmem:[%s208 + $0x228] sm:$0xff]
        %v319 = vld [vmem:[%s208 + $0x230] sm:$0xff]
        %v320 = vld [vmem:[%s208 + $0x238] sm:$0xff]
        %v321 = vld [vmem:[%s208 + $0x240] sm:$0xff]
        %v322 = vld [vmem:[%s208 + $0x248] sm:$0xff]
        %v323 = vld [vmem:[%s208 + $0x250] sm:$0xff]
        %v324 = vld [vmem:[%s208 + $0x258] sm:$0xff]
        %v325 = vld [vmem:[%s208 + $0x260] sm:$0xff]
        %v326 = vld [vmem:[%s208 + $0x268] sm:$0xff]
        %v327 = vld [vmem:[%s208 + $0x270] sm:$0xff]
        %v328 = vld [vmem:[%s208 + $0x278] sm:$0xff]
        %v329 = vld [vmem:[%s208 + $0x280] sm:$0xff]
        %v330 = vld [vmem:[%s208 + $0x288] sm:$0xff]
        %v331 = vld [vmem:[%s208 + $0x290] sm:$0xff]
        %v332 = vld [vmem:[%s208 + $0x298] sm:$0xff]
        %v333 = vld [vmem:[%s208 + $0x2a0] sm:$0xff]
        %v334 = vld [vmem:[%s208 + $0x2a8] sm:$0xff]
        %v335 = vld [vmem:[%s208 + $0x2b0] sm:$0xff]
        %v336 = vld [vmem:[%s208 + $0x2b8] sm:$0xff]
        %v337 = vld [vmem:[%s208 + $0x2c0] sm:$0xff]
        %v338 = vld [vmem:[%s208 + $0x2c8] sm:$0xff]
        %v339 = vld [vmem:[%s208 + $0x2d0] sm:$0xff]
        %v340 = vld [vmem:[%s208 + $0x2d8] sm:$0xff]
        %v341 = vld [vmem:[%s208 + $0x2e0] sm:$0xff]
        %v342 = vld [vmem:[%s208 + $0x2e8] sm:$0xff]
        %v343 = vld [vmem:[%s208 + $0x2f0] sm:$0xff]
        %v344 = vld [vmem:[%s208 + $0x2f8] sm:$0xff]
        %v345 = vld [vmem:[%s208 + $0x300] sm:$0xff]
        %v346 = vld [vmem:[%s208 + $0x308] sm:$0xff]
        %v347 = vld [vmem:[%s208 + $0x310] sm:$0xff]
        %v348 = vld [vmem:[%s208 + $0x318] sm:$0xff]
        %v349 = vld [vmem:[%s208 + $0x320] sm:$0xff]
        %v350 = vld [vmem:[%s208 + $0x328] sm:$0xff]
        %v351 = vld [vmem:[%s208 + $0x330] sm:$0xff]
        %v352 = vld [vmem:[%s208 + $0x338] sm:$0xff]
        %v353 = vld [vmem:[%s208 + $0x340] sm:$0xff]
        %v354 = vld [vmem:[%s208 + $0x348] sm:$0xff]
        %v355 = vld [vmem:[%s208 + $0x350] sm:$0xff]
        %v356 = vld [vmem:[%s208 + $0x358] sm:$0xff]
        %v357 = vld [vmem:[%s208 + $0x360] sm:$0xff]
        %v358 = vld [vmem:[%s208 + $0x368] sm:$0xff]
        %v359 = vld [vmem:[%s208 + $0x370] sm:$0xff]
        %v360 = vld [vmem:[%s208 + $0x378] sm:$0xff]
        %v361 = vld [vmem:[%s208 + $0x380] sm:$0xff]
        %v362 = vld [vmem:[%s208 + $0x388] sm:$0xff]
        %v363 = vld [vmem:[%s208 + $0x390] sm:$0xff]
        %v364 = vld [vmem:[%s208 + $0x398] sm:$0xff]
        %v365 = vld [vmem:[%s208 + $0x3a0] sm:$0xff]
        %v366 = vld [vmem:[%s208 + $0x3a8] sm:$0xff]
        %v367 = vld [vmem:[%s208 + $0x3b0] sm:$0xff]
        %v368 = vld [vmem:[%s208 + $0x3b8] sm:$0xff]
        %v369 = vld [vmem:[%s208 + $0x3c0] sm:$0xff]
        %v370 = vld [vmem:[%s208 + $0x3c8] sm:$0xff]
        %v371 = vld [vmem:[%s208 + $0x3d0] sm:$0xff]
        %v372 = vld [vmem:[%s208 + $0x3d8] sm:$0xff]
        %v373 = vld [vmem:[%s208 + $0x3e0] sm:$0xff]
        %v374 = vld [vmem:[%s208 + $0x3e8] sm:$0xff]
        %v375 = vld [vmem:[%s208 + $0x3f0] sm:$0xff]
        %v376 = vld [vmem:[%s208 + $0x3f8] sm:$0xff]
        %v377 = vld [vmem:[%s208 + $0x400] sm:$0xff]
        %v378 = vld [vmem:[%s208 + $0x408] sm:$0xff]
        %v379 = vld [vmem:[%s208 + $0x410] sm:$0xff]
        %v380 = vld [vmem:[%s208 + $0x418] sm:$0xff]
        %v381 = vld [vmem:[%s208 + $0x420] sm:$0xff]
        %v382 = vld [vmem:[%s208 + $0x428] sm:$0xff]
        %v383 = vld [vmem:[%s208 + $0x430] sm:$0xff]
        %v384 = vld [vmem:[%s208 + $0x438] sm:$0xff]
        %v385 = vld [vmem:[%s208 + $0x440] sm:$0xff]
        %v386 = vld [vmem:[%s208 + $0x448] sm:$0xff]
        %v387 = vld [vmem:[%s208 + $0x450] sm:$0xff]
        %v388 = vld [vmem:[%s208 + $0x458] sm:$0xff]
        %v389 = vld [vmem:[%s208 + $0x460] sm:$0xff]
        %v390 = vld [vmem:[%s208 + $0x468] sm:$0xff]
        %v391 = vld [vmem:[%s208 + $0x470] sm:$0xff]
        %v392 = vld [vmem:[%s208 + $0x478] sm:$0xff]
        %v393 = vld [vmem:[%s208 + $0x480] sm:$0xff]
        %v394 = vld [vmem:[%s208 + $0x488] sm:$0xff]
        %v395 = vld [vmem:[%s208 + $0x490] sm:$0xff]
        %v396 = vld [vmem:[%s208 + $0x498] sm:$0xff]
        %v397 = vld [vmem:[%s208 + $0x4a0] sm:$0xff]
        %v398 = vld [vmem:[%s208 + $0x4a8] sm:$0xff]
        %v399 = vld [vmem:[%s208 + $0x4b0] sm:$0xff]
        %v400 = vld [vmem:[%s208 + $0x4b8] sm:$0xff]
        %v401 = vld [vmem:[%s208 + $0x4c0] sm:$0xff]
        %v402 = vld [vmem:[%s208 + $0x4c8] sm:$0xff]
        %v403 = vld [vmem:[%s208 + $0x4d0] sm:$0xff]
        %v404 = vld [vmem:[%s208 + $0x4d8] sm:$0xff]
        %v405 = vld [vmem:[%s208 + $0x4e0] sm:$0xff]
        %v406 = vld [vmem:[%s208 + $0x4e8] sm:$0xff]
        %v407 = vld [vmem:[%s208 + $0x4f0] sm:$0xff]
        %v408 = vld [vmem:[%s208 + $0x4f8] sm:$0xff]
        %v409 = vld [vmem:[%s208 + $0x500] sm:$0xff]
        %v410 = vld [vmem:[%s208 + $0x508] sm:$0xff]
        %v411 = vld [vmem:[%s208 + $0x510] sm:$0xff]
        %v412 = vld [vmem:[%s208 + $0x518] sm:$0xff]
        %v413 = vld [vmem:[%s208 + $0x520] sm:$0xff]
        %v414 = vld [vmem:[%s208 + $0x528] sm:$0xff]
        %v415 = vld [vmem:[%s208 + $0x530] sm:$0xff]
        %v416 = vld [vmem:[%s208 + $0x538] sm:$0xff]
        %v417 = vld [vmem:[%s208 + $0x540] sm:$0xff]
        %v418 = vld [vmem:[%s208 + $0x548] sm:$0xff]
        %v419 = vld [vmem:[%s208 + $0x550] sm:$0xff]
        %v420 = vld [vmem:[%s208 + $0x558] sm:$0xff]
        %v421 = vld [vmem:[%s208 + $0x560] sm:$0xff]
        %v422 = vld [vmem:[%s208 + $0x568] sm:$0xff]
        %v423 = vld [vmem:[%s208 + $0x570] sm:$0xff]
        %v424 = vld [vmem:[%s208 + $0x578] sm:$0xff]
        %v425 = vld [vmem:[%s208 + $0x580] sm:$0xff]
        %v426 = vld [vmem:[%s208 + $0x588] sm:$0xff]
        %v427 = vld [vmem:[%s208 + $0x590] sm:$0xff]
        %v428 = vld [vmem:[%s208 + $0x598] sm:$0xff]
        %v429 = vld [vmem:[%s208 + $0x5a0] sm:$0xff]
        %v430 = vld [vmem:[%s208 + $0x5a8] sm:$0xff]
        %v431 = vld [vmem:[%s208 + $0x5b0] sm:$0xff]
        %v432 = vld [vmem:[%s208 + $0x5b8] sm:$0xff]
        %v433 = vld [vmem:[%s208 + $0x5c0] sm:$0xff]
        %v434 = vld [vmem:[%s208 + $0x5c8] sm:$0xff]
        %v435 = vld [vmem:[%s208 + $0x5d0] sm:$0xff]
        %v436 = vld [vmem:[%s208 + $0x5d8] sm:$0xff]
        %v437 = vld [vmem:[%s208 + $0x5e0] sm:$0xff]
        %v438 = vld [vmem:[%s208 + $0x5e8] sm:$0xff]
        %v439 = vld [vmem:[%s208 + $0x5f0] sm:$0xff]
        %v440 = vld [vmem:[%s208 + $0x5f8] sm:$0xff]
        %v441 = vld [vmem:[%s208 + $0x600] sm:$0xff]
        %v442 = vld [vmem:[%s208 + $0x608] sm:$0xff]
        %v443 = vld [vmem:[%s208 + $0x610] sm:$0xff]
        %v444 = vld [vmem:[%s208 + $0x618] sm:$0xff]
        %v445 = vld [vmem:[%s208 + $0x620] sm:$0xff]
        %v446 = vld [vmem:[%s208 + $0x628] sm:$0xff]
        %v447 = vld [vmem:[%s208 + $0x630] sm:$0xff]
        %v448 = vld [vmem:[%s208 + $0x638] sm:$0xff]
        %v449 = vld [vmem:[%s208 + $0x640] sm:$0xff]
        %v450 = vld [vmem:[%s208 + $0x648] sm:$0xff]
        %v451 = vld [vmem:[%s208 + $0x650] sm:$0xff]
        %v452 = vld [vmem:[%s208 + $0x658] sm:$0xff]
        %v453 = vld [vmem:[%s208 + $0x660] sm:$0xff]
        %v454 = vld [vmem:[%s208 + $0x668] sm:$0xff]
        %v455 = vld [vmem:[%s208 + $0x670] sm:$0xff]
        %v456 = vld [vmem:[%s208 + $0x678] sm:$0xff]
        %v457 = vld [vmem:[%s208 + $0x680] sm:$0xff]
        %v458 = vld [vmem:[%s208 + $0x688] sm:$0xff]
        %v459 = vld [vmem:[%s208 + $0x690] sm:$0xff]
        %v460 = vld [vmem:[%s208 + $0x698] sm:$0xff]
        %v461 = vld [vmem:[%s208 + $0x6a0] sm:$0xff]
        %v462 = vld [vmem:[%s208 + $0x6a8] sm:$0xff]
        %v463 = vld [vmem:[%s208 + $0x6b0] sm:$0xff]
        %v464 = vld [vmem:[%s208 + $0x6b8] sm:$0xff]
        %v465 = vld [vmem:[%s208 + $0x6c0] sm:$0xff]
        %v466 = vld [vmem:[%s208 + $0x6c8] sm:$0xff]
        %v467 = vld [vmem:[%s208 + $0x6d0] sm:$0xff]
        %v468 = vld [vmem:[%s208 + $0x6d8] sm:$0xff]
        %v469 = vld [vmem:[%s208 + $0x6e0] sm:$0xff]
        %v470 = vld [vmem:[%s208 + $0x6e8] sm:$0xff]
        %v471 = vld [vmem:[%s208 + $0x6f0] sm:$0xff]
        %v472 = vld [vmem:[%s208 + $0x6f8] sm:$0xff]
        %v473 = vld [vmem:[%s208 + $0x700] sm:$0xff]
        %v474 = vld [vmem:[%s208 + $0x708] sm:$0xff]
        %v475 = vld [vmem:[%s208 + $0x710] sm:$0xff]
        %v476 = vld [vmem:[%s208 + $0x718] sm:$0xff]
        %v477 = vld [vmem:[%s208 + $0x720] sm:$0xff]
        %v478 = vld [vmem:[%s208 + $0x728] sm:$0xff]
        %v479 = vld [vmem:[%s208 + $0x730] sm:$0xff]
        %v480 = vld [vmem:[%s208 + $0x738] sm:$0xff]
        %v481 = vld [vmem:[%s208 + $0x740] sm:$0xff]
        %v482 = vld [vmem:[%s208 + $0x748] sm:$0xff]
        %v483 = vld [vmem:[%s208 + $0x750] sm:$0xff]
        %v484 = vld [vmem:[%s208 + $0x758] sm:$0xff]
        %v485 = vld [vmem:[%s208 + $0x760] sm:$0xff]
        %v486 = vld [vmem:[%s208 + $0x768] sm:$0xff]
        %v487 = vld [vmem:[%s208 + $0x770] sm:$0xff]
        %v488 = vld [vmem:[%s208 + $0x778] sm:$0xff]
        %v489 = vld [vmem:[%s208 + $0x780] sm:$0xff]
        %v490 = vld [vmem:[%s208 + $0x788] sm:$0xff]
        %v491 = vld [vmem:[%s208 + $0x790] sm:$0xff]
        %v492 = vld [vmem:[%s208 + $0x798] sm:$0xff]
        %v493 = vld [vmem:[%s208 + $0x7a0] sm:$0xff]
        %v494 = vld [vmem:[%s208 + $0x7a8] sm:$0xff]
        %v495 = vld [vmem:[%s208 + $0x7b0] sm:$0xff]
        %v496 = vld [vmem:[%s208 + $0x7b8] sm:$0xff]
        %v497 = vld [vmem:[%s208 + $0x7c0] sm:$0xff]
        %v498 = vld [vmem:[%s208 + $0x7c8] sm:$0xff]
        %v499 = vld [vmem:[%s208 + $0x7d0] sm:$0xff]
        %v500 = vld [vmem:[%s208 + $0x7d8] sm:$0xff]
        %v501 = vld [vmem:[%s208 + $0x7e0] sm:$0xff]
        %v502 = vld [vmem:[%s208 + $0x7e8] sm:$0xff]
        %v503 = vld [vmem:[%s208 + $0x7f0] sm:$0xff]
        %v504 = vld [vmem:[%s208 + $0x7f8] sm:$0xff]
        %v505 = vstv %s248
        %v506 = vadd.f32 %v249, %v505
        %v507 = vadd.f32 %v250, %v505
        %v508 = vadd.f32 %v251, %v505
        %v509 = vadd.f32 %v252, %v505
        %v510 = vadd.f32 %v253, %v505
        %v511 = vadd.f32 %v254, %v505
        %v512 = vadd.f32 %v255, %v505
        %v513 = vadd.f32 %v256, %v505
        %v514 = vadd.f32 %v257, %v505
        %v515 = vadd.f32 %v258, %v505
        %v516 = vadd.f32 %v259, %v505
        %v517 = vadd.f32 %v260, %v505
        %v518 = vadd.f32 %v261, %v505
        %v519 = vadd.f32 %v262, %v505
        %v520 = vadd.f32 %v263, %v505
        %v521 = vadd.f32 %v264, %v505
        %v522 = vadd.f32 %v265, %v505
        %v523 = vadd.f32 %v266, %v505
        %v524 = vadd.f32 %v267, %v505
        %v525 = vadd.f32 %v268, %v505
        %v526 = vadd.f32 %v269, %v505
        %v527 = vadd.f32 %v270, %v505
        %v528 = vadd.f32 %v271, %v505
        %v529 = vadd.f32 %v272, %v505
        %v530 = vadd.f32 %v273, %v505
        %v531 = vadd.f32 %v274, %v505
        %v532 = vadd.f32 %v275, %v505
        %v533 = vadd.f32 %v276, %v505
        %v534 = vadd.f32 %v277, %v505
        %v535 = vadd.f32 %v278, %v505
        %v536 = vadd.f32 %v279, %v505
        %v537 = vadd.f32 %v280, %v505
        %v538 = vadd.f32 %v281, %v505
        %v539 = vadd.f32 %v282, %v505
        %v540 = vadd.f32 %v283, %v505
        %v541 = vadd.f32 %v284, %v505
        %v542 = vadd.f32 %v285, %v505
        %v543 = vadd.f32 %v286, %v505
        %v544 = vadd.f32 %v287, %v505
        %v545 = vadd.f32 %v288, %v505
        %v546 = vadd.f32 %v289, %v505
        %v547 = vadd.f32 %v290, %v505
        %v548 = vadd.f32 %v291, %v505
        %v549 = vadd.f32 %v292, %v505
        %v550 = vadd.f32 %v293, %v505
        %v551 = vadd.f32 %v294, %v505
        %v552 = vadd.f32 %v295, %v505
        %v553 = vadd.f32 %v296, %v505
        %v554 = vadd.f32 %v297, %v505
        %v555 = vadd.f32 %v298, %v505
        %v556 = vadd.f32 %v299, %v505
        %v557 = vadd.f32 %v300, %v505
        %v558 = vadd.f32 %v301, %v505
        %v559 = vadd.f32 %v302, %v505
        %v560 = vadd.f32 %v303, %v505
        %v561 = vadd.f32 %v304, %v505
        %v562 = vadd.f32 %v305, %v505
        %v563 = vadd.f32 %v306, %v505
        %v564 = vadd.f32 %v307, %v505
        %v565 = vadd.f32 %v308, %v505
        %v566 = vadd.f32 %v309, %v505
        %v567 = vadd.f32 %v310, %v505
        %v568 = vadd.f32 %v311, %v505
        %v569 = vadd.f32 %v312, %v505
        %v570 = vadd.f32 %v313, %v505
        %v571 = vadd.f32 %v314, %v505
        %v572 = vadd.f32 %v315, %v505
        %v573 = vadd.f32 %v316, %v505
        %v574 = vadd.f32 %v317, %v505
        %v575 = vadd.f32 %v318, %v505
        %v576 = vadd.f32 %v319, %v505
        %v577 = vadd.f32 %v320, %v505
        %v578 = vadd.f32 %v321, %v505
        %v579 = vadd.f32 %v322, %v505
        %v580 = vadd.f32 %v323, %v505
        %v581 = vadd.f32 %v324, %v505
        %v582 = vadd.f32 %v325, %v505
        %v583 = vadd.f32 %v326, %v505
        %v584 = vadd.f32 %v327, %v505
        %v585 = vadd.f32 %v328, %v505
        %v586 = vadd.f32 %v329, %v505
        %v587 = vadd.f32 %v330, %v505
        %v588 = vadd.f32 %v331, %v505
        %v589 = vadd.f32 %v332, %v505
        %v590 = vadd.f32 %v333, %v505
        %v591 = vadd.f32 %v334, %v505
        %v592 = vadd.f32 %v335, %v505
        %v593 = vadd.f32 %v336, %v505
        %v594 = vadd.f32 %v337, %v505
        %v595 = vadd.f32 %v338, %v505
        %v596 = vadd.f32 %v339, %v505
        %v597 = vadd.f32 %v340, %v505
        %v598 = vadd.f32 %v341, %v505
        %v599 = vadd.f32 %v342, %v505
        %v600 = vadd.f32 %v343, %v505
        %v601 = vadd.f32 %v344, %v505
        %v602 = vadd.f32 %v345, %v505
        %v603 = vadd.f32 %v346, %v505
        %v604 = vadd.f32 %v347, %v505
        %v605 = vadd.f32 %v348, %v505
        %v606 = vadd.f32 %v349, %v505
        %v607 = vadd.f32 %v350, %v505
        %v608 = vadd.f32 %v351, %v505
        %v609 = vadd.f32 %v352, %v505
        %v610 = vadd.f32 %v353, %v505
        %v611 = vadd.f32 %v354, %v505
        %v612 = vadd.f32 %v355, %v505
        %v613 = vadd.f32 %v356, %v505
        %v614 = vadd.f32 %v357, %v505
        %v615 = vadd.f32 %v358, %v505
        %v616 = vadd.f32 %v359, %v505
        %v617 = vadd.f32 %v360, %v505
        %v618 = vadd.f32 %v361, %v505
        %v619 = vadd.f32 %v362, %v505
        %v620 = vadd.f32 %v363, %v505
        %v621 = vadd.f32 %v364, %v505
        %v622 = vadd.f32 %v365, %v505
        %v623 = vadd.f32 %v366, %v505
        %v624 = vadd.f32 %v367, %v505
        %v625 = vadd.f32 %v368, %v505
        %v626 = vadd.f32 %v369, %v505
        %v627 = vadd.f32 %v370, %v505
        %v628 = vadd.f32 %v371, %v505
        %v629 = vadd.f32 %v372, %v505
        %v630 = vadd.f32 %v373, %v505
        %v631 = vadd.f32 %v374, %v505
        %v632 = vadd.f32 %v375, %v505
        %v633 = vadd.f32 %v376, %v505
        %v634 = vadd.f32 %v377, %v505
        %v635 = vadd.f32 %v378, %v505
        %v636 = vadd.f32 %v379, %v505
        %v637 = vadd.f32 %v380, %v505
        %v638 = vadd.f32 %v381, %v505
        %v639 = vadd.f32 %v382, %v505
        %v640 = vadd.f32 %v383, %v505
        %v641 = vadd.f32 %v384, %v505
        %v642 = vadd.f32 %v385, %v505
        %v643 = vadd.f32 %v386, %v505
        %v644 = vadd.f32 %v387, %v505
        %v645 = vadd.f32 %v388, %v505
        %v646 = vadd.f32 %v389, %v505
        %v647 = vadd.f32 %v390, %v505
        %v648 = vadd.f32 %v391, %v505
        %v649 = vadd.f32 %v392, %v505
        %v650 = vadd.f32 %v393, %v505
        %v651 = vadd.f32 %v394, %v505
        %v652 = vadd.f32 %v395, %v505
        %v653 = vadd.f32 %v396, %v505
        %v654 = vadd.f32 %v397, %v505
        %v655 = vadd.f32 %v398, %v505
        %v656 = vadd.f32 %v399, %v505
        %v657 = vadd.f32 %v400, %v505
        %v658 = vadd.f32 %v401, %v505
        %v659 = vadd.f32 %v402, %v505
        %v660 = vadd.f32 %v403, %v505
        %v661 = vadd.f32 %v404, %v505
        %v662 = vadd.f32 %v405, %v505
        %v663 = vadd.f32 %v406, %v505
        %v664 = vadd.f32 %v407, %v505
        %v665 = vadd.f32 %v408, %v505
        %v666 = vadd.f32 %v409, %v505
        %v667 = vadd.f32 %v410, %v505
        %v668 = vadd.f32 %v411, %v505
        %v669 = vadd.f32 %v412, %v505
        %v670 = vadd.f32 %v413, %v505
        %v671 = vadd.f32 %v414, %v505
        %v672 = vadd.f32 %v415, %v505
        %v673 = vadd.f32 %v416, %v505
        %v674 = vadd.f32 %v417, %v505
        %v675 = vadd.f32 %v418, %v505
        %v676 = vadd.f32 %v419, %v505
        %v677 = vadd.f32 %v420, %v505
        %v678 = vadd.f32 %v421, %v505
        %v679 = vadd.f32 %v422, %v505
        %v680 = vadd.f32 %v423, %v505
        %v681 = vadd.f32 %v424, %v505
        %v682 = vadd.f32 %v425, %v505
        %v683 = vadd.f32 %v426, %v505
        %v684 = vadd.f32 %v427, %v505
        %v685 = vadd.f32 %v428, %v505
        %v686 = vadd.f32 %v429, %v505
        %v687 = vadd.f32 %v430, %v505
        %v688 = vadd.f32 %v431, %v505
        %v689 = vadd.f32 %v432, %v505
        %v690 = vadd.f32 %v433, %v505
        %v691 = vadd.f32 %v434, %v505
        %v692 = vadd.f32 %v435, %v505
        %v693 = vadd.f32 %v436, %v505
        %v694 = vadd.f32 %v437, %v505
        %v695 = vadd.f32 %v438, %v505
        %v696 = vadd.f32 %v439, %v505
        %v697 = vadd.f32 %v440, %v505
        %v698 = vadd.f32 %v441, %v505
        %v699 = vadd.f32 %v442, %v505
        %v700 = vadd.f32 %v443, %v505
        %v701 = vadd.f32 %v444, %v505
        %v702 = vadd.f32 %v445, %v505
        %v703 = vadd.f32 %v446, %v505
        %v704 = vadd.f32 %v447, %v505
        %v705 = vadd.f32 %v448, %v505
        %v706 = vadd.f32 %v449, %v505
        %v707 = vadd.f32 %v450, %v505
        %v708 = vadd.f32 %v451, %v505
        %v709 = vadd.f32 %v452, %v505
        %v710 = vadd.f32 %v453, %v505
        %v711 = vadd.f32 %v454, %v505
        %v712 = vadd.f32 %v455, %v505
        %v713 = vadd.f32 %v456, %v505
        %v714 = vadd.f32 %v457, %v505
        %v715 = vadd.f32 %v458, %v505
        %v716 = vadd.f32 %v459, %v505
        %v717 = vadd.f32 %v460, %v505
        %v718 = vadd.f32 %v461, %v505
        %v719 = vadd.f32 %v462, %v505
        %v720 = vadd.f32 %v463, %v505
        %v721 = vadd.f32 %v464, %v505
        %v722 = vadd.f32 %v465, %v505
        %v723 = vadd.f32 %v466, %v505
        %v724 = vadd.f32 %v467, %v505
        %v725 = vadd.f32 %v468, %v505
        %v726 = vadd.f32 %v469, %v505
        %v727 = vadd.f32 %v470, %v505
        %v728 = vadd.f32 %v471, %v505
        %v729 = vadd.f32 %v472, %v505
        %v730 = vadd.f32 %v473, %v505
        %v731 = vadd.f32 %v474, %v505
        %v732 = vadd.f32 %v475, %v505
        %v733 = vadd.f32 %v476, %v505
        %v734 = vadd.f32 %v477, %v505
        %v735 = vadd.f32 %v478, %v505
        %v736 = vadd.f32 %v479, %v505
        %v737 = vadd.f32 %v480, %v505
        %v738 = vadd.f32 %v481, %v505
        %v739 = vadd.f32 %v482, %v505
        %v740 = vadd.f32 %v483, %v505
        %v741 = vadd.f32 %v484, %v505
        %v742 = vadd.f32 %v485, %v505
        %v743 = vadd.f32 %v486, %v505
        %v744 = vadd.f32 %v487, %v505
        %v745 = vadd.f32 %v488, %v505
        %v746 = vadd.f32 %v489, %v505
        %v747 = vadd.f32 %v490, %v505
        %v748 = vadd.f32 %v491, %v505
        %v749 = vadd.f32 %v492, %v505
        %v750 = vadd.f32 %v493, %v505
        %v751 = vadd.f32 %v494, %v505
        %v752 = vadd.f32 %v495, %v505
        %v753 = vadd.f32 %v496, %v505
        %v754 = vadd.f32 %v497, %v505
        %v755 = vadd.f32 %v498, %v505
        %v756 = vadd.f32 %v499, %v505
        %v757 = vadd.f32 %v500, %v505
        %v758 = vadd.f32 %v501, %v505
        %v759 = vadd.f32 %v502, %v505
        %v760 = vadd.f32 %v503, %v505
        %v761 = vadd.f32 %v504, %v505
        %762 = vst [vmem:[%s230] sm:$0xff] %v506
        %763 = vst [vmem:[%s230 + $0x8] sm:$0xff] %v507
        %764 = vst [vmem:[%s230 + $0x10] sm:$0xff] %v508
        %765 = vst [vmem:[%s230 + $0x18] sm:$0xff] %v509
        %766 = vst [vmem:[%s230 + $0x20] sm:$0xff] %v510
        %767 = vst [vmem:[%s230 + $0x28] sm:$0xff] %v511
        %768 = vst [vmem:[%s230 + $0x30] sm:$0xff] %v512
        %769 = vst [vmem:[%s230 + $0x38] sm:$0xff] %v513
        %770 = vst [vmem:[%s230 + $0x40] sm:$0xff] %v514
        %771 = vst [vmem:[%s230 + $0x48] sm:$0xff] %v515
        %772 = vst [vmem:[%s230 + $0x50] sm:$0xff] %v516
        %773 = vst [vmem:[%s230 + $0x58] sm:$0xff] %v517
        %774 = vst [vmem:[%s230 + $0x60] sm:$0xff] %v518
        %775 = vst [vmem:[%s230 + $0x68] sm:$0xff] %v519
        %776 = vst [vmem:[%s230 + $0x70] sm:$0xff] %v520
        %777 = vst [vmem:[%s230 + $0x78] sm:$0xff] %v521
        %778 = vst [vmem:[%s230 + $0x80] sm:$0xff] %v522
        %779 = vst [vmem:[%s230 + $0x88] sm:$0xff] %v523
        %780 = vst [vmem:[%s230 + $0x90] sm:$0xff] %v524
        %781 = vst [vmem:[%s230 + $0x98] sm:$0xff] %v525
        %782 = vst [vmem:[%s230 + $0xa0] sm:$0xff] %v526
        %783 = vst [vmem:[%s230 + $0xa8] sm:$0xff] %v527
        %784 = vst [vmem:[%s230 + $0xb0] sm:$0xff] %v528
        %785 = vst [vmem:[%s230 + $0xb8] sm:$0xff] %v529
        %786 = vst [vmem:[%s230 + $0xc0] sm:$0xff] %v530
        %787 = vst [vmem:[%s230 + $0xc8] sm:$0xff] %v531
        %788 = vst [vmem:[%s230 + $0xd0] sm:$0xff] %v532
        %789 = vst [vmem:[%s230 + $0xd8] sm:$0xff] %v533
        %790 = vst [vmem:[%s230 + $0xe0] sm:$0xff] %v534
        %791 = vst [vmem:[%s230 + $0xe8] sm:$0xff] %v535
        %792 = vst [vmem:[%s230 + $0xf0] sm:$0xff] %v536
        %793 = vst [vmem:[%s230 + $0xf8] sm:$0xff] %v537
        %794 = vst [vmem:[%s230 + $0x100] sm:$0xff] %v538
        %795 = vst [vmem:[%s230 + $0x108] sm:$0xff] %v539
        %796 = vst [vmem:[%s230 + $0x110] sm:$0xff] %v540
        %797 = vst [vmem:[%s230 + $0x118] sm:$0xff] %v541
        %798 = vst [vmem:[%s230 + $0x120] sm:$0xff] %v542
        %799 = vst [vmem:[%s230 + $0x128] sm:$0xff] %v543
        %800 = vst [vmem:[%s230 + $0x130] sm:$0xff] %v544
        %801 = vst [vmem:[%s230 + $0x138] sm:$0xff] %v545
        %802 = vst [vmem:[%s230 + $0x140] sm:$0xff] %v546
        %803 = vst [vmem:[%s230 + $0x148] sm:$0xff] %v547
        %804 = vst [vmem:[%s230 + $0x150] sm:$0xff] %v548
        %805 = vst [vmem:[%s230 + $0x158] sm:$0xff] %v549
        %806 = vst [vmem:[%s230 + $0x160] sm:$0xff] %v550
        %807 = vst [vmem:[%s230 + $0x168] sm:$0xff] %v551
        %808 = vst [vmem:[%s230 + $0x170] sm:$0xff] %v552
        %809 = vst [vmem:[%s230 + $0x178] sm:$0xff] %v553
        %810 = vst [vmem:[%s230 + $0x180] sm:$0xff] %v554
        %811 = vst [vmem:[%s230 + $0x188] sm:$0xff] %v555
        %812 = vst [vmem:[%s230 + $0x190] sm:$0xff] %v556
        %813 = vst [vmem:[%s230 + $0x198] sm:$0xff] %v557
        %814 = vst [vmem:[%s230 + $0x1a0] sm:$0xff] %v558
        %815 = vst [vmem:[%s230 + $0x1a8] sm:$0xff] %v559
        %816 = vst [vmem:[%s230 + $0x1b0] sm:$0xff] %v560
        %817 = vst [vmem:[%s230 + $0x1b8] sm:$0xff] %v561
        %818 = vst [vmem:[%s230 + $0x1c0] sm:$0xff] %v562
        %819 = vst [vmem:[%s230 + $0x1c8] sm:$0xff] %v563
        %820 = vst [vmem:[%s230 + $0x1d0] sm:$0xff] %v564
        %821 = vst [vmem:[%s230 + $0x1d8] sm:$0xff] %v565
        %822 = vst [vmem:[%s230 + $0x1e0] sm:$0xff] %v566
        %823 = vst [vmem:[%s230 + $0x1e8] sm:$0xff] %v567
        %824 = vst [vmem:[%s230 + $0x1f0] sm:$0xff] %v568
        %825 = vst [vmem:[%s230 + $0x1f8] sm:$0xff] %v569
        %826 = vst [vmem:[%s230 + $0x200] sm:$0xff] %v570
        %827 = vst [vmem:[%s230 + $0x208] sm:$0xff] %v571
        %828 = vst [vmem:[%s230 + $0x210] sm:$0xff] %v572
        %829 = vst [vmem:[%s230 + $0x218] sm:$0xff] %v573
        %830 = vst [vmem:[%s230 + $0x220] sm:$0xff] %v574
        %831 = vst [vmem:[%s230 + $0x228] sm:$0xff] %v575
        %832 = vst [vmem:[%s230 + $0x230] sm:$0xff] %v576
        %833 = vst [vmem:[%s230 + $0x238] sm:$0xff] %v577
        %834 = vst [vmem:[%s230 + $0x240] sm:$0xff] %v578
        %835 = vst [vmem:[%s230 + $0x248] sm:$0xff] %v579
        %836 = vst [vmem:[%s230 + $0x250] sm:$0xff] %v580
        %837 = vst [vmem:[%s230 + $0x258] sm:$0xff] %v581
        %838 = vst [vmem:[%s230 + $0x260] sm:$0xff] %v582
        %839 = vst [vmem:[%s230 + $0x268] sm:$0xff] %v583
        %840 = vst [vmem:[%s230 + $0x270] sm:$0xff] %v584
        %841 = vst [vmem:[%s230 + $0x278] sm:$0xff] %v585
        %842 = vst [vmem:[%s230 + $0x280] sm:$0xff] %v586
        %843 = vst [vmem:[%s230 + $0x288] sm:$0xff] %v587
        %844 = vst [vmem:[%s230 + $0x290] sm:$0xff] %v588
        %845 = vst [vmem:[%s230 + $0x298] sm:$0xff] %v589
        %846 = vst [vmem:[%s230 + $0x2a0] sm:$0xff] %v590
        %847 = vst [vmem:[%s230 + $0x2a8] sm:$0xff] %v591
        %848 = vst [vmem:[%s230 + $0x2b0] sm:$0xff] %v592
        %849 = vst [vmem:[%s230 + $0x2b8] sm:$0xff] %v593
        %850 = vst [vmem:[%s230 + $0x2c0] sm:$0xff] %v594
        %851 = vst [vmem:[%s230 + $0x2c8] sm:$0xff] %v595
        %852 = vst [vmem:[%s230 + $0x2d0] sm:$0xff] %v596
        %853 = vst [vmem:[%s230 + $0x2d8] sm:$0xff] %v597
        %854 = vst [vmem:[%s230 + $0x2e0] sm:$0xff] %v598
        %855 = vst [vmem:[%s230 + $0x2e8] sm:$0xff] %v599
        %856 = vst [vmem:[%s230 + $0x2f0] sm:$0xff] %v600
        %857 = vst [vmem:[%s230 + $0x2f8] sm:$0xff] %v601
        %858 = vst [vmem:[%s230 + $0x300] sm:$0xff] %v602
        %859 = vst [vmem:[%s230 + $0x308] sm:$0xff] %v603
        %860 = vst [vmem:[%s230 + $0x310] sm:$0xff] %v604
        %861 = vst [vmem:[%s230 + $0x318] sm:$0xff] %v605
        %862 = vst [vmem:[%s230 + $0x320] sm:$0xff] %v606
        %863 = vst [vmem:[%s230 + $0x328] sm:$0xff] %v607
        %864 = vst [vmem:[%s230 + $0x330] sm:$0xff] %v608
        %865 = vst [vmem:[%s230 + $0x338] sm:$0xff] %v609
        %866 = vst [vmem:[%s230 + $0x340] sm:$0xff] %v610
        %867 = vst [vmem:[%s230 + $0x348] sm:$0xff] %v611
        %868 = vst [vmem:[%s230 + $0x350] sm:$0xff] %v612
        %869 = vst [vmem:[%s230 + $0x358] sm:$0xff] %v613
        %870 = vst [vmem:[%s230 + $0x360] sm:$0xff] %v614
        %871 = vst [vmem:[%s230 + $0x368] sm:$0xff] %v615
        %872 = vst [vmem:[%s230 + $0x370] sm:$0xff] %v616
        %873 = vst [vmem:[%s230 + $0x378] sm:$0xff] %v617
        %874 = vst [vmem:[%s230 + $0x380] sm:$0xff] %v618
        %875 = vst [vmem:[%s230 + $0x388] sm:$0xff] %v619
        %876 = vst [vmem:[%s230 + $0x390] sm:$0xff] %v620
        %877 = vst [vmem:[%s230 + $0x398] sm:$0xff] %v621
        %878 = vst [vmem:[%s230 + $0x3a0] sm:$0xff] %v622
        %879 = vst [vmem:[%s230 + $0x3a8] sm:$0xff] %v623
        %880 = vst [vmem:[%s230 + $0x3b0] sm:$0xff] %v624
        %881 = vst [vmem:[%s230 + $0x3b8] sm:$0xff] %v625
        %882 = vst [vmem:[%s230 + $0x3c0] sm:$0xff] %v626
        %883 = vst [vmem:[%s230 + $0x3c8] sm:$0xff] %v627
        %884 = vst [vmem:[%s230 + $0x3d0] sm:$0xff] %v628
        %885 = vst [vmem:[%s230 + $0x3d8] sm:$0xff] %v629
        %886 = vst [vmem:[%s230 + $0x3e0] sm:$0xff] %v630
        %887 = vst [vmem:[%s230 + $0x3e8] sm:$0xff] %v631
        %888 = vst [vmem:[%s230 + $0x3f0] sm:$0xff] %v632
        %889 = vst [vmem:[%s230 + $0x3f8] sm:$0xff] %v633
        %890 = vst [vmem:[%s230 + $0x400] sm:$0xff] %v634
        %891 = vst [vmem:[%s230 + $0x408] sm:$0xff] %v635
        %892 = vst [vmem:[%s230 + $0x410] sm:$0xff] %v636
        %893 = vst [vmem:[%s230 + $0x418] sm:$0xff] %v637
        %894 = vst [vmem:[%s230 + $0x420] sm:$0xff] %v638
        %895 = vst [vmem:[%s230 + $0x428] sm:$0xff] %v639
        %896 = vst [vmem:[%s230 + $0x430] sm:$0xff] %v640
        %897 = vst [vmem:[%s230 + $0x438] sm:$0xff] %v641
        %898 = vst [vmem:[%s230 + $0x440] sm:$0xff] %v642
        %899 = vst [vmem:[%s230 + $0x448] sm:$0xff] %v643
        %900 = vst [vmem:[%s230 + $0x450] sm:$0xff] %v644
        %901 = vst [vmem:[%s230 + $0x458] sm:$0xff] %v645
        %902 = vst [vmem:[%s230 + $0x460] sm:$0xff] %v646
        %903 = vst [vmem:[%s230 + $0x468] sm:$0xff] %v647
        %904 = vst [vmem:[%s230 + $0x470] sm:$0xff] %v648
        %905 = vst [vmem:[%s230 + $0x478] sm:$0xff] %v649
        %906 = vst [vmem:[%s230 + $0x480] sm:$0xff] %v650
        %907 = vst [vmem:[%s230 + $0x488] sm:$0xff] %v651
        %908 = vst [vmem:[%s230 + $0x490] sm:$0xff] %v652
        %909 = vst [vmem:[%s230 + $0x498] sm:$0xff] %v653
        %910 = vst [vmem:[%s230 + $0x4a0] sm:$0xff] %v654
        %911 = vst [vmem:[%s230 + $0x4a8] sm:$0xff] %v655
        %912 = vst [vmem:[%s230 + $0x4b0] sm:$0xff] %v656
        %913 = vst [vmem:[%s230 + $0x4b8] sm:$0xff] %v657
        %914 = vst [vmem:[%s230 + $0x4c0] sm:$0xff] %v658
        %915 = vst [vmem:[%s230 + $0x4c8] sm:$0xff] %v659
        %916 = vst [vmem:[%s230 + $0x4d0] sm:$0xff] %v660
        %917 = vst [vmem:[%s230 + $0x4d8] sm:$0xff] %v661
        %918 = vst [vmem:[%s230 + $0x4e0] sm:$0xff] %v662
        %919 = vst [vmem:[%s230 + $0x4e8] sm:$0xff] %v663
        %920 = vst [vmem:[%s230 + $0x4f0] sm:$0xff] %v664
        %921 = vst [vmem:[%s230 + $0x4f8] sm:$0xff] %v665
        %922 = vst [vmem:[%s230 + $0x500] sm:$0xff] %v666
        %923 = vst [vmem:[%s230 + $0x508] sm:$0xff] %v667
        %924 = vst [vmem:[%s230 + $0x510] sm:$0xff] %v668
        %925 = vst [vmem:[%s230 + $0x518] sm:$0xff] %v669
        %926 = vst [vmem:[%s230 + $0x520] sm:$0xff] %v670
        %927 = vst [vmem:[%s230 + $0x528] sm:$0xff] %v671
        %928 = vst [vmem:[%s230 + $0x530] sm:$0xff] %v672
        %929 = vst [vmem:[%s230 + $0x538] sm:$0xff] %v673
        %930 = vst [vmem:[%s230 + $0x540] sm:$0xff] %v674
        %931 = vst [vmem:[%s230 + $0x548] sm:$0xff] %v675
        %932 = vst [vmem:[%s230 + $0x550] sm:$0xff] %v676
        %933 = vst [vmem:[%s230 + $0x558] sm:$0xff] %v677
        %934 = vst [vmem:[%s230 + $0x560] sm:$0xff] %v678
        %935 = vst [vmem:[%s230 + $0x568] sm:$0xff] %v679
        %936 = vst [vmem:[%s230 + $0x570] sm:$0xff] %v680
        %937 = vst [vmem:[%s230 + $0x578] sm:$0xff] %v681
        %938 = vst [vmem:[%s230 + $0x580] sm:$0xff] %v682
        %939 = vst [vmem:[%s230 + $0x588] sm:$0xff] %v683
        %940 = vst [vmem:[%s230 + $0x590] sm:$0xff] %v684
        %941 = vst [vmem:[%s230 + $0x598] sm:$0xff] %v685
        %942 = vst [vmem:[%s230 + $0x5a0] sm:$0xff] %v686
        %943 = vst [vmem:[%s230 + $0x5a8] sm:$0xff] %v687
        %944 = vst [vmem:[%s230 + $0x5b0] sm:$0xff] %v688
        %945 = vst [vmem:[%s230 + $0x5b8] sm:$0xff] %v689
        %946 = vst [vmem:[%s230 + $0x5c0] sm:$0xff] %v690
        %947 = vst [vmem:[%s230 + $0x5c8] sm:$0xff] %v691
        %948 = vst [vmem:[%s230 + $0x5d0] sm:$0xff] %v692
        %949 = vst [vmem:[%s230 + $0x5d8] sm:$0xff] %v693
        %950 = vst [vmem:[%s230 + $0x5e0] sm:$0xff] %v694
        %951 = vst [vmem:[%s230 + $0x5e8] sm:$0xff] %v695
        %952 = vst [vmem:[%s230 + $0x5f0] sm:$0xff] %v696
        %953 = vst [vmem:[%s230 + $0x5f8] sm:$0xff] %v697
        %954 = vst [vmem:[%s230 + $0x600] sm:$0xff] %v698
        %955 = vst [vmem:[%s230 + $0x608] sm:$0xff] %v699
        %956 = vst [vmem:[%s230 + $0x610] sm:$0xff] %v700
        %957 = vst [vmem:[%s230 + $0x618] sm:$0xff] %v701
        %958 = vst [vmem:[%s230 + $0x620] sm:$0xff] %v702
        %959 = vst [vmem:[%s230 + $0x628] sm:$0xff] %v703
        %960 = vst [vmem:[%s230 + $0x630] sm:$0xff] %v704
        %961 = vst [vmem:[%s230 + $0x638] sm:$0xff] %v705
        %962 = vst [vmem:[%s230 + $0x640] sm:$0xff] %v706
        %963 = vst [vmem:[%s230 + $0x648] sm:$0xff] %v707
        %964 = vst [vmem:[%s230 + $0x650] sm:$0xff] %v708
        %965 = vst [vmem:[%s230 + $0x658] sm:$0xff] %v709
        %966 = vst [vmem:[%s230 + $0x660] sm:$0xff] %v710
        %967 = vst [vmem:[%s230 + $0x668] sm:$0xff] %v711
        %968 = vst [vmem:[%s230 + $0x670] sm:$0xff] %v712
        %969 = vst [vmem:[%s230 + $0x678] sm:$0xff] %v713
        %970 = vst [vmem:[%s230 + $0x680] sm:$0xff] %v714
        %971 = vst [vmem:[%s230 + $0x688] sm:$0xff] %v715
        %972 = vst [vmem:[%s230 + $0x690] sm:$0xff] %v716
        %973 = vst [vmem:[%s230 + $0x698] sm:$0xff] %v717
        %974 = vst [vmem:[%s230 + $0x6a0] sm:$0xff] %v718
        %975 = vst [vmem:[%s230 + $0x6a8] sm:$0xff] %v719
        %976 = vst [vmem:[%s230 + $0x6b0] sm:$0xff] %v720
        %977 = vst [vmem:[%s230 + $0x6b8] sm:$0xff] %v721
        %978 = vst [vmem:[%s230 + $0x6c0] sm:$0xff] %v722
        %979 = vst [vmem:[%s230 + $0x6c8] sm:$0xff] %v723
        %980 = vst [vmem:[%s230 + $0x6d0] sm:$0xff] %v724
        %981 = vst [vmem:[%s230 + $0x6d8] sm:$0xff] %v725
        %982 = vst [vmem:[%s230 + $0x6e0] sm:$0xff] %v726
        %983 = vst [vmem:[%s230 + $0x6e8] sm:$0xff] %v727
        %984 = vst [vmem:[%s230 + $0x6f0] sm:$0xff] %v728
        %985 = vst [vmem:[%s230 + $0x6f8] sm:$0xff] %v729
        %986 = vst [vmem:[%s230 + $0x700] sm:$0xff] %v730
        %987 = vst [vmem:[%s230 + $0x708] sm:$0xff] %v731
        %988 = vst [vmem:[%s230 + $0x710] sm:$0xff] %v732
        %989 = vst [vmem:[%s230 + $0x718] sm:$0xff] %v733
        %990 = vst [vmem:[%s230 + $0x720] sm:$0xff] %v734
        %991 = vst [vmem:[%s230 + $0x728] sm:$0xff] %v735
        %992 = vst [vmem:[%s230 + $0x730] sm:$0xff] %v736
        %993 = vst [vmem:[%s230 + $0x738] sm:$0xff] %v737
        %994 = vst [vmem:[%s230 + $0x740] sm:$0xff] %v738
        %995 = vst [vmem:[%s230 + $0x748] sm:$0xff] %v739
        %996 = vst [vmem:[%s230 + $0x750] sm:$0xff] %v740
        %997 = vst [vmem:[%s230 + $0x758] sm:$0xff] %v741
        %998 = vst [vmem:[%s230 + $0x760] sm:$0xff] %v742
        %999 = vst [vmem:[%s230 + $0x768] sm:$0xff] %v743
        %1000 = vst [vmem:[%s230 + $0x770] sm:$0xff] %v744
        %1001 = vst [vmem:[%s230 + $0x778] sm:$0xff] %v745
        %1002 = vst [vmem:[%s230 + $0x780] sm:$0xff] %v746
        %1003 = vst [vmem:[%s230 + $0x788] sm:$0xff] %v747
        %1004 = vst [vmem:[%s230 + $0x790] sm:$0xff] %v748
        %1005 = vst [vmem:[%s230 + $0x798] sm:$0xff] %v749
        %1006 = vst [vmem:[%s230 + $0x7a0] sm:$0xff] %v750
        %1007 = vst [vmem:[%s230 + $0x7a8] sm:$0xff] %v751
        %1008 = vst [vmem:[%s230 + $0x7b0] sm:$0xff] %v752
        %1009 = vst [vmem:[%s230 + $0x7b8] sm:$0xff] %v753
        %1010 = vst [vmem:[%s230 + $0x7c0] sm:$0xff] %v754
        %1011 = vst [vmem:[%s230 + $0x7c8] sm:$0xff] %v755
        %1012 = vst [vmem:[%s230 + $0x7d0] sm:$0xff] %v756
        %1013 = vst [vmem:[%s230 + $0x7d8] sm:$0xff] %v757
        %1014 = vst [vmem:[%s230 + $0x7e0] sm:$0xff] %v758
        %1015 = vst [vmem:[%s230 + $0x7e8] sm:$0xff] %v759
        %1016 = vst [vmem:[%s230 + $0x7f0] sm:$0xff] %v760
        %1017 = vst [vmem:[%s230 + $0x7f8] sm:$0xff] %v761
        %s1018 = sand.u32 %s111, 1
        %s1019 = scalar_lea.sflag [#allocation4], %s1018
        %s1020 = sand.u32 %s111, 1
        %s1021 = smul.addr %s1020, 2048
        %s1022 = scalar_lea.vmem [#allocation8], %s1021
        // Predicated region
        $region45: #{tpu_custom_call.1} parent=31 // pred_check
          %p1023 = pneg %p121
        $region46: #{tpu_custom_call.1} parent=31 // pred_check_branch
          %1025 = sbr.rel (%p1023) target = $region48
        $region47: #{tpu_custom_call.1} parent=31 // pred_region
          %s1026 = smul.u32 32, %s23
          %s1027 = smul.u32 8, %s24
          %s1029 = ssub.s32 32768, 32768
          %1030 = vsyncadd %s1019, %s1029
          %s1031 = smul.addr %s1026, 8
          %s1032 = sadd.s32 %s1027, %s1031
          %s1033 = smul.addr %s1032, 128
          %s1034 = scalar_lea.hbm %s3, %s1033
          %s1035 = sshll.u32 %s1022, 4
          %s1036 = int_to_ptr.vmem [resolvable:$true] %s1035
          %1041 = dma.vmem_to_hbm [thread:$0]  %s1036, 32768, %s1034, %s1019, 1024, 1024, 64
        $region48: #{tpu_custom_call.1} parent=31 // pred_fallthru
          _
      $region32: #{tpu_custom_call.1} parent=5 // pred_fallthru
        _
      %p1042 = scmp.le.s32.totalorder 2, %s14
      // Predicated region
      $region49: #{tpu_custom_call.1} parent=5 // pred_check
        %p1043 = pneg %p1042
      $region50: #{tpu_custom_call.1} parent=5 // pred_check_branch
        %1045 = sbr.rel (%p1043) target = $region52
      $region51: #{tpu_custom_call.1} parent=5 // pred_region
        %s1046 = ssub.s32 %s14, 2
        // Predicated region
        $region53: #{tpu_custom_call.1} parent=51 // pred_check
          %p1047 = pneg %p127
        $region54: #{tpu_custom_call.1} parent=51 // pred_check_branch
          %1049 = sbr.rel (%p1047) target = $region56
        $region55: #{tpu_custom_call.1} parent=51 // pred_region
          %s1050 = sand.u32 %s112, 1
          %s1051 = scalar_lea.sflag [#allocation4], %s1050
          %s1052 = sand.u32 %s112, 1
          %s1053 = smul.addr %s1052, 2048
          %s1054 = scalar_lea.vmem [#allocation8], %s1053
          %1055 = dma.done %s1051, 32768
        $region56: #{tpu_custom_call.1} parent=51 // pred_fallthru
          _
      $region52: #{tpu_custom_call.1} parent=5 // pred_fallthru
        _
    $region6: #{tpu_custom_call.1} parent=1 // loop_footer
      %s18 = sadd.s32 1, %s14
    $region7: #{tpu_custom_call.1} parent=1 // loop_footer_branch
      %13 = sbr.rel target = $region3
    $region8: #{tpu_custom_call.1} parent=1 // loop_exit
      _
    %1056 = vsyncpa [#allocation3], 1
    %s1057 = scalar_lea.sflag [#allocation3], 1
    %1058 = vsyncpa %s1057, 1
    %1059 = vsyncpa [#allocation6], 1
    %1060 = vsyncpa [#allocation4], 1
    %s1061 = scalar_lea.sflag [#allocation4], 1
    %1062 = vsyncpa %s1061, 1

</llo_original>
